<compile_context>
chip_gen: v7x
topology: tpu7x:2x2x1
jax: 0.10.0
libtpu: 0.0.40
codegen_flags: <defaults>
</compile_context>

<pallas_src>
import functools

import jax
import jax.numpy as jnp
from jax.experimental import pallas as pl
from jax.experimental.pallas import tpu as pltpu

NUM_CLASSES = 10
NP = 128  # per-modality head output padded lane-dense; sliced back to NUM_CLASSES


# ----------------------------- Pallas kernel --------------------------------
def _gradmod_kernel(p_ref, w_ref, be_ref, wh_ref, c_ref,
                    ma_ref, mv_ref, msum_ref, acc_ref, *, tb, th):
    """grid = (batch tiles [parallel], spatial tiles [arbitrary/reduction])."""
    j = pl.program_id(1)

    @pl.when(j == 0)
    def _():
        acc_ref[...] = jnp.zeros_like(acc_ref)

    # Fused audio+visual conv: ONE (TB*TH, K) x (K, 2*C_enc) matmul per grid step
    # (block-diagonal weights cover both modalities), bias + ReLU, then a single
    # full-tile spatial-sum accumulation (== adaptive_avg_pool2d(1); the 1/HW
    # factor is folded into the head weights).
    k = p_ref.shape[-1]
    p = p_ref[...].reshape(tb * th, k)                                  # bf16
    z = jnp.dot(p, w_ref[...], preferred_element_type=jnp.float32)     # (TB*TH, 2C) f32
    z = jnp.maximum(z + be_ref[...], 0.0)
    if tb == 1:
        acc_ref[...] += jnp.sum(z, axis=0, keepdims=True)
    else:
        acc_ref[...] += jnp.sum(z.reshape(tb, th, z.shape[-1]), axis=1)

    @pl.when(j == pl.num_programs(1) - 1)
    def _():
        # pooled features f = [sum_a | sum_v]  (TB, 2*C_enc), f32 (1/HW in wh_ref)
        f = acc_ref[...]
        # folded 3-pass head: a single 256-lane matmul; lanes [:NP] -> m_a, [NP:] -> m_v
        av = jnp.dot(f, wh_ref[...], preferred_element_type=jnp.float32)  # (TB, 2*NP)
        cc = c_ref[...]                                                   # (2, NP)
        m_a = av[:, :NP] + cc[0:1, :]     # c_a = 0.5*(bh - A0 + V0)
        m_v = av[:, NP:] + cc[1:2, :]     # c_v = 0.5*(bh + A0 - V0)
        ma_ref[0] = m_a
        mv_ref[0] = m_v
        msum_ref[0] = m_a + m_v


# ------------------------------ JAX glue -------------------------------------
def im2col_3x3(x_nhwc):
    """3x3, stride 1, 'same' padding patches. (B,H,W,C) -> (B, H*W, 9*C)."""
    B, H, W, C = x_nhwc.shape
    xp = jnp.pad(x_nhwc, ((0, 0), (1, 1), (1, 1), (0, 0)))
    cols = [xp[:, di:di + H, dj:dj + W, :] for di in range(3) for dj in range(3)]
    return jnp.concatenate(cols, axis=-1).reshape(B, H * W, 9 * C)


def init_params(key, c_audio, c_visual, c_enc):
    ks = jax.random.split(key, 6)
    scale = 0.05
    return dict(
        wa=scale * jax.random.normal(ks[0], (9 * c_audio, c_enc), jnp.float32),
        ba=scale * jax.random.normal(ks[1], (1, c_enc), jnp.float32),
        wv=scale * jax.random.normal(ks[2], (9 * c_visual, c_enc), jnp.float32),
        bv=scale * jax.random.normal(ks[3], (1, c_enc), jnp.float32),
        wh=scale * jax.random.normal(ks[4], (2 * c_enc, NUM_CLASSES), jnp.float32),
        bh=scale * jax.random.normal(ks[5], (1, NUM_CLASSES), jnp.float32),
    )


def gradmod_forward(audio_nchw, visual_nchw, params):
    B, Ca, H, W = audio_nchw.shape
    Cv = visual_nchw.shape[1]
    HW = H * W
    c_enc = params["ba"].shape[1]
    K = 9 * (Ca + Cv)
    inv_hw = 1.0 / HW

    # NCHW -> NHWC, im2col, fuse modalities along the contraction dim.
    # TODO(synk): at resnet widths / on v5e this wrapper im2col should move in-kernel
    # (9 shifted-slice dots on raw NHWC tiles) to cut input HBM traffic ~9x.
    audio = jnp.transpose(audio_nchw, (0, 2, 3, 1)).astype(jnp.float32)
    image = jnp.transpose(visual_nchw, (0, 2, 3, 1)).astype(jnp.float32)
    p3 = jnp.concatenate([im2col_3x3(audio), im2col_3x3(image)], axis=-1)  # (B,HW,K)
    p3 = p3.astype(jnp.bfloat16)

    # Block-diagonal encoder weights: one conv matmul covers both modalities.
    w_block = jnp.zeros((K, 2 * c_enc), jnp.float32)
    w_block = w_block.at[:9 * Ca, :c_enc].set(params["wa"])
    w_block = w_block.at[9 * Ca:, c_enc:].set(params["wv"])
    w_block = w_block.astype(jnp.bfloat16)
    b_enc = jnp.concatenate([params["ba"], params["bv"]], axis=1)  # (1, 2*C_enc) f32

    # Zero-input passes are input-independent: encoder(0) = relu(bias) per position,
    # pooled -> relu(bias). Fold into tiny per-class constants (exact math, f32).
    # TODO(synk): with a real resnet18 the zero pass is still input-independent; it would
    #             be precomputed once outside the kernel by actually running the encoder
    #             on zeros (not via this relu(bias) formula).
    fa0 = jnp.maximum(params["ba"], 0.0)
    fv0 = jnp.maximum(params["bv"], 0.0)
    a0 = fa0 @ params["wh"][:c_enc]            # (1, 10)
    v0 = fv0 @ params["wh"][c_enc:]            # (1, 10)
    bh = params["bh"]
    c_pack = jnp.zeros((2, NP), jnp.float32)
    c_pack = c_pack.at[0, :NUM_CLASSES].set((0.5 * (bh - a0 + v0))[0])
    c_pack = c_pack.at[1, :NUM_CLASSES].set((0.5 * (bh + a0 - v0))[0])

    # Fused head weights: ONE (2*c_enc, 2*NP) matrix. Lanes [:NP] -> m_a (audio rows
    # only), lanes [NP:] -> m_v (visual rows only). 1/HW folded in; kept in f32.
    wh_f = jnp.zeros((2 * c_enc, 2 * NP), jnp.float32)
    wh_f = wh_f.at[:c_enc, :NUM_CLASSES].set(params["wh"][:c_enc] * inv_hw)
    wh_f = wh_f.at[c_enc:, NP:NP + NUM_CLASSES].set(params["wh"][c_enc:] * inv_hw)

    # ------------------------------- tiling ----------------------------------
    # Batch tile: keep >= 2 steps on the "parallel" axis so both v7x TCs are busy
    # (no effect on single-TC v5e/v6e). Divisor search handles any B (e.g. B=12).
    TB = 8 if B >= 16 else max(1, B // 2)
    while B % TB != 0:
        TB -= 1
    # Spatial reduction tile: big blocks (per-step overhead ~0.35us). Full HW when
    # small; 1024-wide reduction tiles at bigger resolutions.
    TH = HW if HW <= 4096 else (1024 if HW % 1024 == 0 else HW)
    grid = (B // TB, HW // TH)

    # VMEM budget from the actual buffers (double-buffered pipeline + conv
    # intermediate + scratch), never below the 32 MiB default, capped for v7x.
    bytes_in = TB * TH * K * 2
    bytes_inv = ((K * 2 * c_enc) * 2 + (2 * c_enc) * 4
                 + (2 * c_enc) * (2 * NP) * 4 + 2 * NP * 4)
    bytes_out = 3 * TB * NP * 4
    bytes_z = TB * TH * (2 * c_enc) * 4
    bytes_scr = TB * (2 * c_enc) * 4
    vmem_needed = 2 * (bytes_in + bytes_inv + bytes_out) + bytes_z + bytes_scr
    vmem_limit = int(min(56 * 2 ** 20, max(32 * 2 ** 20, 2 * vmem_needed)))

    kernel = functools.partial(_gradmod_kernel, tb=TB, th=TH)
    out_sds = jax.ShapeDtypeStruct((B // TB, TB, NP), jnp.float32)

    flops = 2 * B * HW * K * (2 * c_enc) + 2 * B * (2 * c_enc) * (2 * NP)
    bytes_accessed = (p3.size * 2 + w_block.size * 2 + b_enc.size * 4
                      + wh_f.size * 4 + c_pack.size * 4 + 3 * B * NP * 4)

    m_a, m_v, m_sum = pl.pallas_call(
        kernel,
        out_shape=(out_sds, out_sds, out_sds),
        grid_spec=pltpu.PrefetchScalarGridSpec(
            num_scalar_prefetch=0,
            grid=grid,
            in_specs=[
                pl.BlockSpec((TB, TH, K), lambda i, j: (i, j, 0)),        # im2col tiles
                pl.BlockSpec((K, 2 * c_enc), lambda i, j: (0, 0)),        # conv weights
                pl.BlockSpec((1, 2 * c_enc), lambda i, j: (0, 0)),        # conv bias
                pl.BlockSpec((2 * c_enc, 2 * NP), lambda i, j: (0, 0)),   # fused head W
                pl.BlockSpec((2, NP), lambda i, j: (0, 0)),               # [c_a; c_v]
            ],
            out_specs=[
                pl.BlockSpec((1, TB, NP), lambda i, j: (i, 0, 0)),
                pl.BlockSpec((1, TB, NP), lambda i, j: (i, 0, 0)),
                pl.BlockSpec((1, TB, NP), lambda i, j: (i, 0, 0)),
            ],
            scratch_shapes=[pltpu.VMEM((TB, 2 * c_enc), jnp.float32)],
        ),
        compiler_params=pltpu.CompilerParams(
            dimension_semantics=("parallel", "arbitrary"),
            vmem_limit_bytes=vmem_limit,
        ),
        cost_estimate=pl.CostEstimate(flops=flops, transcendentals=0,
                                      bytes_accessed=bytes_accessed),
    )(p3, w_block, b_enc, wh_f, c_pack)

    m_a = m_a.reshape(B, NP)[:, :NUM_CLASSES]
    m_v = m_v.reshape(B, NP)[:, :NUM_CLASSES]
    m_sum = m_sum.reshape(B, NP)[:, :NUM_CLASSES]
    return m_a, m_v, m_sum


# --------------------------- pure-JAX reference -------------------------------
def gradmod_reference(audio_nchw, visual_nchw, params):
    def enc(x_nchw, w, b):
        x = jnp.transpose(x_nchw, (0, 2, 3, 1)).astype(jnp.float32)
        B, H, W, C = x.shape
        xp = jnp.pad(x, ((0, 0), (1, 1), (1, 1), (0, 0)))
        cols = [xp[:, di:di + H, dj:dj + W, :] for di in range(3) for dj in range(3)]
        p = jnp.concatenate(cols, axis=-1).reshape(B * H * W, 9 * C)
        z = jnp.maximum(p @ w + b, 0.0).reshape(B, H * W, -1)
        return z.mean(axis=1)

    def head(fa, fv):
        return jnp.concatenate([fa, fv], axis=1) @ params["wh"] + params["bh"]

    fa = enc(audio_nchw, params["wa"], params["ba"])
    fv = enc(visual_nchw, params["wv"], params["bv"])
    fa0 = enc(jnp.zeros_like(audio_nchw), params["wa"], params["ba"])
    fv0 = enc(jnp.zeros_like(visual_nchw), params["wv"], params["bv"])
    total, pad_v, pad_a = head(fa, fv), head(fa, fv0), head(fa0, fv)
    m_a = 0.5 * (total - pad_a + pad_v)
    m_v = 0.5 * (total - pad_v + pad_a)
    return m_a, m_v, m_a + m_v


# --------------------------------- main ---------------------------------------
if __name__ == "__main__":
    key = jax.random.PRNGKey(0)
    k_a, k_v, k_p = jax.random.split(key, 3)

    B, H, W = 2, 16, 16
    C_AUDIO, C_VISUAL, C_ENC = 1, 3, 64   # small stand-ins for resnet18's 512-d

    audio = jax.random.normal(k_a, (B, C_AUDIO, H, W), jnp.float32)    # NCHW
    visual = jax.random.normal(k_v, (B, C_VISUAL, H, W), jnp.float32)  # NCHW
    params = init_params(k_p, C_AUDIO, C_VISUAL, C_ENC)

    m_a, m_v, m_sum = gradmod_forward(audio, visual, params)
    jax.block_until_ready((m_a, m_v, m_sum))

    r_a, r_v, r_sum = gradmod_reference(audio, visual, params)
    # tolerance loosened for bf16 MXU conv inputs (f32 accumulation, f32 head)
    assert jnp.allclose(m_a, r_a, atol=1e-2), "m_a mismatch vs reference"
    assert jnp.allclose(m_v, r_v, atol=1e-2), "m_v mismatch vs reference"
    assert jnp.allclose(m_sum, r_sum, atol=1e-2), "m_a+m_v mismatch vs reference"

    print("KERNEL_OK")
</pallas_src>

<mosaic_0001>
module attributes {stable_mosaic.version = 11 : i64} {
  func.func @_gradmod_kernel(%arg0: i32, %arg1: i32, %arg2: memref<1x256x36xbf16, #tpu.memory_space<vmem>>, %arg3: memref<36x128xbf16, #tpu.memory_space<vmem>>, %arg4: memref<1x128xf32, #tpu.memory_space<vmem>>, %arg5: memref<128x256xf32, #tpu.memory_space<vmem>>, %arg6: memref<2x128xf32, #tpu.memory_space<vmem>>, %arg7: memref<1x1x128xf32, #tpu.memory_space<vmem>>, %arg8: memref<1x1x128xf32, #tpu.memory_space<vmem>>, %arg9: memref<1x1x128xf32, #tpu.memory_space<vmem>>, %arg10: memref<1x128xf32, #tpu.memory_space<vmem>>) attributes {dimension_semantics = [#tpu.dimension_semantics<parallel>, #tpu.dimension_semantics<arbitrary>], iteration_bounds = array<i64: 2, 1>, scalar_prefetch = 0 : i64, scratch_operands = 1 : i64, tpu.core_type = #tpu.core_type<tc>, window_params = [{transform_indices = @transform_0, window_bounds = array<i64: 1, 256, 36>}, {pipeline_mode = #tpu.pipeline_mode<synchronous>, transform_indices = @transform_1, window_bounds = array<i64: 36, 128>}, {pipeline_mode = #tpu.pipeline_mode<synchronous>, transform_indices = @transform_2, window_bounds = array<i64: 1, 128>}, {pipeline_mode = #tpu.pipeline_mode<synchronous>, transform_indices = @transform_3, window_bounds = array<i64: 128, 256>}, {pipeline_mode = #tpu.pipeline_mode<synchronous>, transform_indices = @transform_4, window_bounds = array<i64: 2, 128>}, {transform_indices = @transform_5, window_bounds = array<i64: 1, 1, 128>}, {transform_indices = @transform_6, window_bounds = array<i64: 1, 1, 128>}, {transform_indices = @transform_7, window_bounds = array<i64: 1, 1, 128>}]} {
    %c0_i32 = arith.constant 0 : i32
    %0 = arith.cmpi eq, %arg1, %c0_i32 : i32
    %1 = arith.extui %0 : i1 to i32
    %c0_i32_0 = arith.constant 0 : i32
    %2 = arith.cmpi ne, %1, %c0_i32_0 : i32
    scf.if %2 {
      %cst_15 = arith.constant 0.000000e+00 : f32
      %20 = vector.broadcast %cst_15 : f32 to vector<1x128xf32>
      %c0_16 = arith.constant 0 : index
      %c0_17 = arith.constant 0 : index
      %21 = vector.load %arg10[%c0_16, %c0_17] : memref<1x128xf32, #tpu.memory_space<vmem>>, vector<1x128xf32>
      tpu.vector_store %arg10[%c0_16, %c0_17], %20 {strides = array<i32>} : memref<1x128xf32, #tpu.memory_space<vmem>>, vector<1x128xf32>,
    } else {
    }
    %c0 = arith.constant 0 : index
    %c0_1 = arith.constant 0 : index
    %c0_2 = arith.constant 0 : index
    %3 = vector.load %arg2[%c0, %c0_1, %c0_2] : memref<1x256x36xbf16, #tpu.memory_space<vmem>>, vector<1x256x36xbf16>
    %4 = vector.shape_cast %3 : vector<1x256x36xbf16> to vector<256x36xbf16>
    %c0_3 = arith.constant 0 : index
    %c0_4 = arith.constant 0 : index
    %5 = vector.load %arg3[%c0_3, %c0_4] : memref<36x128xbf16, #tpu.memory_space<vmem>>, vector<36x128xbf16>
    %cst = arith.constant dense<0.000000e+00> : vector<256x128xf32>
    %6 = tpu.matmul %4, %5, %cst {dimension_numbers = #tpu.dot_dimension_numbers<[1], [0], [0], [1], [0, 0, 1, 1], [], []>} : vector<256x36xbf16>, vector<36x128xbf16>, vector<256x128xf32> -> vector<256x128xf32>
    %c0_5 = arith.constant 0 : index
    %c0_6 = arith.constant 0 : index
    %7 = vector.load %arg4[%c0_5, %c0_6] : memref<1x128xf32, #tpu.memory_space<vmem>>, vector<1x128xf32>
    %8 = vector.broadcast %7 : vector<1x128xf32> to vector<256x128xf32>
    %9 = arith.addf %6, %8 : vector<256x128xf32>
    %cst_7 = arith.constant 0.000000e+00 : f32
    %10 = vector.broadcast %cst_7 : f32 to vector<256x128xf32>
    %11 = arith.maximumf %9, %10 : vector<256x128xf32>
    %c0_8 = arith.constant 0 : index
    %c0_9 = arith.constant 0 : index
    %12 = vector.load %arg10[%c0_8, %c0_9] : memref<1x128xf32, #tpu.memory_space<vmem>>, vector<1x128xf32>
    %cst_10 = arith.constant dense<0.000000e+00> : vector<128xf32>
    %13 = vector.multi_reduction <add>, %11, %cst_10 [0] : vector<256x128xf32> to vector<128xf32>
    %14 = vector.shape_cast %13 : vector<128xf32> to vector<1x128xf32>
    %15 = arith.addf %12, %14 : vector<1x128xf32>
    %c0_11 = arith.constant 0 : index
    %c0_12 = arith.constant 0 : index
    %16 = vector.load %arg10[%c0_11, %c0_12] : memref<1x128xf32, #tpu.memory_space<vmem>>, vector<1x128xf32>
    tpu.vector_store %arg10[%c0_11, %c0_12], %15 {strides = array<i32>} : memref<1x128xf32, #tpu.memory_space<vmem>>, vector<1x128xf32>,
    %c0_i32_13 = arith.constant 0 : i32
    %17 = arith.cmpi eq, %arg1, %c0_i32_13 : i32
    %18 = arith.extui %17 : i1 to i32
    %c0_i32_14 = arith.constant 0 : i32
    %19 = arith.cmpi ne, %18, %c0_i32_14 : i32
    scf.if %19 {
      %c0_15 = arith.constant 0 : index
      %c0_16 = arith.constant 0 : index
      %20 = vector.load %arg10[%c0_15, %c0_16] : memref<1x128xf32, #tpu.memory_space<vmem>>, vector<1x128xf32>
      %c0_17 = arith.constant 0 : index
      %c0_18 = arith.constant 0 : index
      %21 = vector.load %arg5[%c0_17, %c0_18] : memref<128x256xf32, #tpu.memory_space<vmem>>, vector<128x256xf32>
      %cst_19 = arith.constant dense<0.000000e+00> : vector<1x256xf32>
      %22 = tpu.matmul %20, %21, %cst_19 {dimension_numbers = #tpu.dot_dimension_numbers<[1], [0], [0], [1], [0, 0, 1, 1], [], []>} : vector<1x128xf32>, vector<128x256xf32>, vector<1x256xf32> -> vector<1x256xf32>
      %c0_20 = arith.constant 0 : index
      %c0_21 = arith.constant 0 : index
      %23 = vector.load %arg6[%c0_20, %c0_21] : memref<2x128xf32, #tpu.memory_space<vmem>>, vector<2x128xf32>
      %24 = vector.extract_strided_slice %22 {offsets = [0, 0], sizes = [1, 128], strides = [1, 1]} : vector<1x256xf32> to vector<1x128xf32>
      %25 = vector.extract_strided_slice %23 {offsets = [0, 0], sizes = [1, 128], strides = [1, 1]} : vector<2x128xf32> to vector<1x128xf32>
      %26 = arith.addf %24, %25 : vector<1x128xf32>
      %27 = vector.extract_strided_slice %22 {offsets = [0, 128], sizes = [1, 128], strides = [1, 1]} : vector<1x256xf32> to vector<1x128xf32>
      %28 = vector.extract_strided_slice %23 {offsets = [1, 0], sizes = [1, 128], strides = [1, 1]} : vector<2x128xf32> to vector<1x128xf32>
      %29 = arith.addf %27, %28 : vector<1x128xf32>
      %c0_22 = arith.constant 0 : index
      %c0_23 = arith.constant 0 : index
      %c0_24 = arith.constant 0 : index
      %30 = vector.load %arg7[%c0_22, %c0_23, %c0_24] : memref<1x1x128xf32, #tpu.memory_space<vmem>>, vector<1x1x128xf32>
      %31 = vector.shape_cast %30 : vector<1x1x128xf32> to vector<1x128xf32>
      %32 = vector.shape_cast %26 : vector<1x128xf32> to vector<1x1x128xf32>
      tpu.vector_store %arg7[%c0_22, %c0_23, %c0_24], %32 {strides = array<i32>} : memref<1x1x128xf32, #tpu.memory_space<vmem>>, vector<1x1x128xf32>,
      %c0_25 = arith.constant 0 : index
      %c0_26 = arith.constant 0 : index
      %c0_27 = arith.constant 0 : index
      %33 = vector.load %arg8[%c0_25, %c0_26, %c0_27] : memref<1x1x128xf32, #tpu.memory_space<vmem>>, vector<1x1x128xf32>
      %34 = vector.shape_cast %33 : vector<1x1x128xf32> to vector<1x128xf32>
      %35 = vector.shape_cast %29 : vector<1x128xf32> to vector<1x1x128xf32>
      tpu.vector_store %arg8[%c0_25, %c0_26, %c0_27], %35 {strides = array<i32>} : memref<1x1x128xf32, #tpu.memory_space<vmem>>, vector<1x1x128xf32>,
      %36 = arith.addf %26, %29 : vector<1x128xf32>
      %c0_28 = arith.constant 0 : index
      %c0_29 = arith.constant 0 : index
      %c0_30 = arith.constant 0 : index
      %37 = vector.load %arg9[%c0_28, %c0_29, %c0_30] : memref<1x1x128xf32, #tpu.memory_space<vmem>>, vector<1x1x128xf32>
      %38 = vector.shape_cast %37 : vector<1x1x128xf32> to vector<1x128xf32>
      %39 = vector.shape_cast %36 : vector<1x128xf32> to vector<1x1x128xf32>
      tpu.vector_store %arg9[%c0_28, %c0_29, %c0_30], %39 {strides = array<i32>} : memref<1x1x128xf32, #tpu.memory_space<vmem>>, vector<1x1x128xf32>,
    } else {
    }
    return
  }
  func.func @transform_0(%arg0: i32, %arg1: i32) -> (i32, i32, i32) {
    %c0_i32 = arith.constant 0 : i32
    %c0_i32_0 = arith.constant 0 : i32
    return %arg0, %arg1, %c0_i32 : i32, i32, i32
  }
  func.func @transform_1(%arg0: i32, %arg1: i32) -> (i32, i32) {
    %c0_i32 = arith.constant 0 : i32
    %c0_i32_0 = arith.constant 0 : i32
    %c0_i32_1 = arith.constant 0 : i32
    return %c0_i32, %c0_i32_0 : i32, i32
  }
  func.func @transform_2(%arg0: i32, %arg1: i32) -> (i32, i32) {
    %c0_i32 = arith.constant 0 : i32
    %c0_i32_0 = arith.constant 0 : i32
    %c0_i32_1 = arith.constant 0 : i32
    return %c0_i32, %c0_i32_0 : i32, i32
  }
  func.func @transform_3(%arg0: i32, %arg1: i32) -> (i32, i32) {
    %c0_i32 = arith.constant 0 : i32
    %c0_i32_0 = arith.constant 0 : i32
    %c0_i32_1 = arith.constant 0 : i32
    return %c0_i32, %c0_i32_0 : i32, i32
  }
  func.func @transform_4(%arg0: i32, %arg1: i32) -> (i32, i32) {
    %c0_i32 = arith.constant 0 : i32
    %c0_i32_0 = arith.constant 0 : i32
    %c0_i32_1 = arith.constant 0 : i32
    return %c0_i32, %c0_i32_0 : i32, i32
  }
  func.func @transform_5(%arg0: i32, %arg1: i32) -> (i32, i32, i32) {
    %c0_i32 = arith.constant 0 : i32
    %c0_i32_0 = arith.constant 0 : i32
    %c0_i32_1 = arith.constant 0 : i32
    return %arg0, %c0_i32, %c0_i32_0 : i32, i32, i32
  }
  func.func @transform_6(%arg0: i32, %arg1: i32) -> (i32, i32, i32) {
    %c0_i32 = arith.constant 0 : i32
    %c0_i32_0 = arith.constant 0 : i32
    %c0_i32_1 = arith.constant 0 : i32
    return %arg0, %c0_i32, %c0_i32_0 : i32, i32, i32
  }
  func.func @transform_7(%arg0: i32, %arg1: i32) -> (i32, i32, i32) {
    %c0_i32 = arith.constant 0 : i32
    %c0_i32_0 = arith.constant 0 : i32
    %c0_i32_1 = arith.constant 0 : i32
    return %arg0, %c0_i32, %c0_i32_0 : i32, i32, i32
  }
}

</mosaic_0001>

<llo_original>
// kernel: tpu_custom_call.1
$region0: #{tpu_custom_call.1}
  #allocation0 [shape = 'u32[]', space=smem, size = 0x4, offset = 0x4, fixed_abs, tag = 'smem constant byte address 0x4 - core index']
  #allocation1 [shape = 'u32[144,128]{1,0:T(1,128)}', space=vmem, size = 0x12000, scoped, tag = 'internal scratch']
  #allocation2 [shape = 'f32[1,128]{1,0:T(1,128)}', space=vmem, size = 0x200, scoped, tag = 'scratch operand']
  %s0 = inlined_call_operand.vmem [shape: bf16[2,256,36], index: 0, kind: input, shape index: {}]
  %s1 = inlined_call_operand.vmem [shape: bf16[36,128], index: 1, kind: input, shape index: {}]
  %s2 = inlined_call_operand.vmem [shape: f32[1,128], index: 2, kind: input, shape index: {}]
  %s3 = inlined_call_operand.vmem [shape: f32[128,256], index: 3, kind: input, shape index: {}]
  %s4 = inlined_call_operand.vmem [shape: f32[2,128], index: 4, kind: input, shape index: {}]
  %s5 = inlined_call_operand.hbm [shape: f32[2,1,128], index: 5, kind: output, shape index: {0}]
  %s6 = inlined_call_operand.hbm [shape: f32[2,1,128], index: 6, kind: output, shape index: {1}]
  %s7 = inlined_call_operand.hbm [shape: f32[2,1,128], index: 7, kind: output, shape index: {2}]
  %8 = xla_tuple %s5, %s6, %s7
  %s9 = sld [smem:[#allocation0]]
  $region77: #{tpu_custom_call.1} parent=0
    _
  %s11 = ssub.s32 1, %s9
  %s12 = scalar_select 0, %s11, %s9
  $region1: #{tpu_custom_call.1} parent=0
    #allocation3 [shape = 'u8[1024]{0}', space=vmem, size = 0x400, scoped, tag = 'output window, operand 0']
    #allocation4 [shape = 's32[2]{0}', space=sflag, size = 0x8, scoped, tag = 'scoped memory for tpu_custom_call.1']
    #allocation5 [shape = 'u8[1024]{0}', space=vmem, size = 0x400, scoped, tag = 'output window, operand 1']
    #allocation6 [shape = 's32[2]{0}', space=sflag, size = 0x8, scoped, tag = 'scoped memory for tpu_custom_call.1']
    #allocation7 [shape = 'u8[1024]{0}', space=vmem, size = 0x400, scoped, tag = 'output window, operand 2']
    %13 = vsyncpa [#allocation4], 0
    %s14 = scalar_lea.sflag [#allocation4], 1
    %15 = vsyncpa %s14, 0
    %16 = vsyncpa [#allocation6], 0
    %s17 = scalar_lea.sflag [#allocation6], 1
    %18 = vsyncpa %s17, 0
    loop: start=0, step=1, limit=4
    $region2: #{tpu_custom_call.1} parent=1 // loop_pre_header
      _
    $region3: #{tpu_custom_call.1} parent=1 // loop_header
      %s20 = sphi 0, %s24
      %p21 = scmp.ge.s32.totalorder %s20, 4
      %s27 = sphi 0, %s39
      %s28 = sphi 0, %s35
      %s29 = sphi 0, %s27
      %s30 = sphi 0, %s28
      %s31 = sphi 0, %s29
      %s32 = sphi 0, %s30
      %s44 = sphi 0, %s46
      %s47 = sphi 0, %s44
      %s48 = sphi 0, %s47
      %s64 = sphi 0, %s48
      %s68 = sphi 0, %s68
      %s70 = sphi 0, %s68
      %s71 = sphi 0, %s70
      %s85 = sphi 0, %s71
      %s89 = sphi 0, %s89
      %s91 = sphi 0, %s89
      %s92 = sphi 0, %s91
      %s106 = sphi 0, %s92
      %s110 = sphi 0, %s110
      %s112 = sphi 0, %s110
      %s113 = sphi 0, %s112
      %s127 = sphi 0, %s113
      %s131 = sphi 0, %s131
      %s133 = sphi 0, %s131
      %s134 = sphi 0, %s133
      %s148 = sphi 0, %s134
      %s154 = sphi 0, %s156
      %s157 = sphi 0, %s154
      %s158 = sphi 0, %s157
      %s174 = sphi 0, %s158
      %s180 = sphi 0, %s182
      %s183 = sphi 0, %s180
      %s184 = sphi 0, %s183
      %s200 = sphi 0, %s184
      %s206 = sphi 0, %s208
      %s209 = sphi 0, %s206
      %s210 = sphi 0, %s209
      %s226 = sphi 0, %s210
    $region4: #{tpu_custom_call.1} parent=1 // loop_header_branch
      %23 = sbr.rel (%p21) target = $region8
    $region5: #{tpu_custom_call.1} parent=1 // loop_body
      %s25 = ssub.s32 %s20, 1
      %s26 = ssub.s32 %s20, 2
      %s33 = sadd.s32 1, %s28
      %p34 = scmp.ge.s32.totalorder %s33, 1
      %s35 = scalar_select %p34, 0, %s33
      %s36 = sadd.s32 1, %s27
      %s37 = scalar_select %p34, %s36, %s27
      %p38 = scmp.ge.s32.totalorder %s37, 2
      %s39 = scalar_select %p38, 0, %s37
      %s40 = ssub.s32 %s27, %s39
      %s41 = ssub.s32 %s28, %s35
      %s42 = sor.u32 %s40, %s41
      %p43 = scmp.eq.s32.totalorder %s42, 0
      %s45 = sadd.s32 %s44, 1
      %s46 = scalar_select %p43, %s44, %s45
      %p49 = pneg %p43
      %p50 = scmp.eq.s32.totalorder %s20, 1
      %p51 = por %p49, %p50
      %p52 = scmp.ne.s32.totalorder %s44, %s47
      %p53 = scmp.eq.s32.totalorder %s20, 0
      %p54 = por %p52, %p53
      %p55 = scmp.ne.s32.totalorder %s44, %s47
      %p56 = scmp.eq.s32.totalorder %s25, 1
      %p57 = por %p55, %p56
      %p58 = scmp.ne.s32.totalorder %s47, %s48
      %p59 = scmp.eq.s32.totalorder %s25, 0
      %p60 = por %p58, %p59
      %p61 = scmp.ne.s32.totalorder %s47, %s48
      %p62 = scmp.eq.s32.totalorder %s26, 1
      %p63 = por %p61, %p62
      %p65 = scmp.ne.s32.totalorder %s48, %s64
      %p66 = scmp.eq.s32.totalorder %s26, 0
      %p67 = por %p65, %p66
      %s69 = sadd.s32 %s68, 1
      %p72 = scmp.eq.s32.totalorder %s20, 1
      %p73 = scmp.ne.s32.totalorder %s68, %s70
      %p74 = scmp.eq.s32.totalorder %s20, 0
      %p75 = por %p73, %p74
      %p76 = scmp.ne.s32.totalorder %s68, %s70
      %p77 = scmp.eq.s32.totalorder %s25, 1
      %p78 = por %p76, %p77
      %p79 = scmp.ne.s32.totalorder %s70, %s71
      %p80 = scmp.eq.s32.totalorder %s25, 0
      %p81 = por %p79, %p80
      %p82 = scmp.ne.s32.totalorder %s70, %s71
      %p83 = scmp.eq.s32.totalorder %s26, 1
      %p84 = por %p82, %p83
      %p86 = scmp.ne.s32.totalorder %s71, %s85
      %p87 = scmp.eq.s32.totalorder %s26, 0
      %p88 = por %p86, %p87
      %s90 = sadd.s32 %s89, 1
      %p93 = scmp.eq.s32.totalorder %s20, 1
      %p94 = scmp.ne.s32.totalorder %s89, %s91
      %p95 = scmp.eq.s32.totalorder %s20, 0
      %p96 = por %p94, %p95
      %p97 = scmp.ne.s32.totalorder %s89, %s91
      %p98 = scmp.eq.s32.totalorder %s25, 1
      %p99 = por %p97, %p98
      %p100 = scmp.ne.s32.totalorder %s91, %s92
      %p101 = scmp.eq.s32.totalorder %s25, 0
      %p102 = por %p100, %p101
      %p103 = scmp.ne.s32.totalorder %s91, %s92
      %p104 = scmp.eq.s32.totalorder %s26, 1
      %p105 = por %p103, %p104
      %p107 = scmp.ne.s32.totalorder %s92, %s106
      %p108 = scmp.eq.s32.totalorder %s26, 0
      %p109 = por %p107, %p108
      %s111 = sadd.s32 %s110, 1
      %p114 = scmp.eq.s32.totalorder %s20, 1
      %p115 = scmp.ne.s32.totalorder %s110, %s112
      %p116 = scmp.eq.s32.totalorder %s20, 0
      %p117 = por %p115, %p116
      %p118 = scmp.ne.s32.totalorder %s110, %s112
      %p119 = scmp.eq.s32.totalorder %s25, 1
      %p120 = por %p118, %p119
      %p121 = scmp.ne.s32.totalorder %s112, %s113
      %p122 = scmp.eq.s32.totalorder %s25, 0
      %p123 = por %p121, %p122
      %p124 = scmp.ne.s32.totalorder %s112, %s113
      %p125 = scmp.eq.s32.totalorder %s26, 1
      %p126 = por %p124, %p125
      %p128 = scmp.ne.s32.totalorder %s113, %s127
      %p129 = scmp.eq.s32.totalorder %s26, 0
      %p130 = por %p128, %p129
      %s132 = sadd.s32 %s131, 1
      %p135 = scmp.eq.s32.totalorder %s20, 1
      %p136 = scmp.ne.s32.totalorder %s131, %s133
      %p137 = scmp.eq.s32.totalorder %s20, 0
      %p138 = por %p136, %p137
      %p139 = scmp.ne.s32.totalorder %s131, %s133
      %p140 = scmp.eq.s32.totalorder %s25, 1
      %p141 = por %p139, %p140
      %p142 = scmp.ne.s32.totalorder %s133, %s134
      %p143 = scmp.eq.s32.totalorder %s25, 0
      %p144 = por %p142, %p143
      %p145 = scmp.ne.s32.totalorder %s133, %s134
      %p146 = scmp.eq.s32.totalorder %s26, 1
      %p147 = por %p145, %p146
      %p149 = scmp.ne.s32.totalorder %s134, %s148
      %p150 = scmp.eq.s32.totalorder %s26, 0
      %p151 = por %p149, %p150
      %s152 = ssub.s32 %s27, %s39
      %p153 = scmp.eq.s32.totalorder %s152, 0
      %s155 = sadd.s32 %s154, 1
      %s156 = scalar_select %p153, %s154, %s155
      %p159 = pneg %p153
      %p160 = scmp.eq.s32.totalorder %s20, 1
      %p161 = por %p159, %p160
      %p162 = scmp.ne.s32.totalorder %s154, %s157
      %p163 = scmp.eq.s32.totalorder %s20, 0
      %p164 = por %p162, %p163
      %p165 = scmp.ne.s32.totalorder %s154, %s157
      %p166 = scmp.eq.s32.totalorder %s25, 1
      %p167 = por %p165, %p166
      %p168 = scmp.ne.s32.totalorder %s157, %s158
      %p169 = scmp.eq.s32.totalorder %s25, 0
      %p170 = por %p168, %p169
      %p171 = scmp.ne.s32.totalorder %s157, %s158
      %p172 = scmp.eq.s32.totalorder %s26, 1
      %p173 = por %p171, %p172
      %p175 = scmp.ne.s32.totalorder %s158, %s174
      %p176 = scmp.eq.s32.totalorder %s26, 0
      %p177 = por %p175, %p176
      %s178 = ssub.s32 %s27, %s39
      %p179 = scmp.eq.s32.totalorder %s178, 0
      %s181 = sadd.s32 %s180, 1
      %s182 = scalar_select %p179, %s180, %s181
      %p185 = pneg %p179
      %p186 = scmp.eq.s32.totalorder %s20, 1
      %p187 = por %p185, %p186
      %p188 = scmp.ne.s32.totalorder %s180, %s183
      %p189 = scmp.eq.s32.totalorder %s20, 0
      %p190 = por %p188, %p189
      %p191 = scmp.ne.s32.totalorder %s180, %s183
      %p192 = scmp.eq.s32.totalorder %s25, 1
      %p193 = por %p191, %p192
      %p194 = scmp.ne.s32.totalorder %s183, %s184
      %p195 = scmp.eq.s32.totalorder %s25, 0
      %p196 = por %p194, %p195
      %p197 = scmp.ne.s32.totalorder %s183, %s184
      %p198 = scmp.eq.s32.totalorder %s26, 1
      %p199 = por %p197, %p198
      %p201 = scmp.ne.s32.totalorder %s184, %s200
      %p202 = scmp.eq.s32.totalorder %s26, 0
      %p203 = por %p201, %p202
      %s204 = ssub.s32 %s27, %s39
      %p205 = scmp.eq.s32.totalorder %s204, 0
      %s207 = sadd.s32 %s206, 1
      %s208 = scalar_select %p205, %s206, %s207
      %p211 = pneg %p205
      %p212 = scmp.eq.s32.totalorder %s20, 1
      %p213 = por %p211, %p212
      %p214 = scmp.ne.s32.totalorder %s206, %s209
      %p215 = scmp.eq.s32.totalorder %s20, 0
      %p216 = por %p214, %p215
      %p217 = scmp.ne.s32.totalorder %s206, %s209
      %p218 = scmp.eq.s32.totalorder %s25, 1
      %p219 = por %p217, %p218
      %p220 = scmp.ne.s32.totalorder %s209, %s210
      %p221 = scmp.eq.s32.totalorder %s25, 0
      %p222 = por %p220, %p221
      %p223 = scmp.ne.s32.totalorder %s209, %s210
      %p224 = scmp.eq.s32.totalorder %s26, 1
      %p225 = por %p223, %p224
      %p227 = scmp.ne.s32.totalorder %s210, %s226
      %p228 = scmp.eq.s32.totalorder %s26, 0
      %p229 = por %p227, %p228
      %p230 = scmp.le.s32.totalorder 1, %s20
      %p231 = scmp.lt.s32.totalorder %s20, 3
      %p232 = pnand %p230, %p231
      %p233 = pneg %p232
      // Predicated region
      $region9: #{tpu_custom_call.1} parent=5 // pred_check
        _
      $region10: #{tpu_custom_call.1} parent=5 // pred_check_branch
        %235 = sbr.rel (%p232) target = $region12
      $region11: #{tpu_custom_call.1} parent=5 // pred_region
        %s236 = ssub.s32 %s20, 1
        // Predicated region
        $region13: #{tpu_custom_call.1} parent=11 // pred_check
          %p237 = pneg %p81
        $region14: #{tpu_custom_call.1} parent=11 // pred_check_branch
          %239 = sbr.rel (%p237) target = $region16
        $region15: #{tpu_custom_call.1} parent=11 // pred_region
          _
        $region16: #{tpu_custom_call.1} parent=11 // pred_fallthru
          _
        // Predicated region
        $region17: #{tpu_custom_call.1} parent=11 // pred_check
          %p240 = pneg %p102
        $region18: #{tpu_custom_call.1} parent=11 // pred_check_branch
          %242 = sbr.rel (%p240) target = $region20
        $region19: #{tpu_custom_call.1} parent=11 // pred_region
          _
        $region20: #{tpu_custom_call.1} parent=11 // pred_fallthru
          _
        // Predicated region
        $region21: #{tpu_custom_call.1} parent=11 // pred_check
          %p243 = pneg %p123
        $region22: #{tpu_custom_call.1} parent=11 // pred_check_branch
          %245 = sbr.rel (%p243) target = $region24
        $region23: #{tpu_custom_call.1} parent=11 // pred_region
          _
        $region24: #{tpu_custom_call.1} parent=11 // pred_fallthru
          _
        // Predicated region
        $region25: #{tpu_custom_call.1} parent=11 // pred_check
          %p246 = pneg %p144
        $region26: #{tpu_custom_call.1} parent=11 // pred_check_branch
          %248 = sbr.rel (%p246) target = $region28
        $region27: #{tpu_custom_call.1} parent=11 // pred_region
          _
        $region28: #{tpu_custom_call.1} parent=11 // pred_fallthru
          _
      $region12: #{tpu_custom_call.1} parent=5 // pred_fallthru
        _
      %p249 = scmp.lt.s32.totalorder %s20, 2
      // Predicated region
      $region29: #{tpu_custom_call.1} parent=5 // pred_check
        %p250 = pneg %p249
      $region30: #{tpu_custom_call.1} parent=5 // pred_check_branch
        %252 = sbr.rel (%p250) target = $region32
      $region31: #{tpu_custom_call.1} parent=5 // pred_region
        // Predicated region
        $region33: #{tpu_custom_call.1} parent=31 // pred_check
          %p253 = pneg %p54
        $region34: #{tpu_custom_call.1} parent=31 // pred_check_branch
          %255 = sbr.rel (%p253) target = $region36
        $region35: #{tpu_custom_call.1} parent=31 // pred_region
          %s256 = smul.u32 32, %s28
          %p257 = scmp.lt.s32.totalorder %s27, 1
          %s258 = scalar_select %p257, %s27, 1
          %p259 = scmp.lt.s32.totalorder %s256, 31
          %s260 = scalar_select %p259, %s256, 31
          %s261 = smul.addr %s258, 32
          %s262 = sadd.s32 %s260, %s261
          %s263 = smul.addr %s262, 4
          %s264 = scalar_lea.vmem %s0, %s263
          %s265 = smul.u32 32, %s28
        $region36: #{tpu_custom_call.1} parent=31 // pred_fallthru
          _
      $region32: #{tpu_custom_call.1} parent=5 // pred_fallthru
        _
      %p266 = scmp.le.s32.totalorder 1, %s20
      %p267 = scmp.lt.s32.totalorder %s20, 3
      %p268 = pnand %p266, %p267
      %p269 = pneg %p268
      // Predicated region
      $region37: #{tpu_custom_call.1} parent=5 // pred_check
        _
      $region38: #{tpu_custom_call.1} parent=5 // pred_check_branch
        %271 = sbr.rel (%p268) target = $region40
      $region39: #{tpu_custom_call.1} parent=5 // pred_region
        %s272 = ssub.s32 %s20, 1
        %s273 = smul.u32 32, %s30
        %p274 = scmp.lt.s32.totalorder %s29, 1
        %s275 = scalar_select %p274, %s29, 1
        %p276 = scmp.lt.s32.totalorder %s273, 31
        %s277 = scalar_select %p276, %s273, 31
        %s278 = smul.addr %s275, 32
        %s279 = sadd.s32 %s277, %s278
        %s280 = smul.addr %s279, 4
        %s281 = scalar_lea.vmem %s0, %s280
        %p282 = pneg %p60
        %p283 = pneg %p57
        %p284 = pneg %p81
        %p285 = pneg %p78
        %p286 = pneg %p102
        %p287 = pneg %p99
        %p288 = pneg %p123
        %p289 = pneg %p120
        %p290 = pneg %p144
        %p291 = pneg %p141
        %p292 = pneg %p170
        %p293 = pneg %p167
        %s294 = sand.u32 %s157, 1
        %s295 = scalar_lea.sflag [#allocation4], %s294
        %s296 = sand.u32 %s157, 1
        %s297 = scalar_lea.vmem [#allocation3], %s296
        %p298 = pneg %p196
        %p299 = pneg %p193
        %s300 = sand.u32 %s25, 1
        %s301 = scalar_lea.sflag [#allocation6], %s300
        %s302 = sand.u32 %s183, 1
        %s303 = scalar_lea.vmem [#allocation5], %s302
        %p304 = pneg %p222
        %p305 = pneg %p219
        %s306 = sand.u32 %s25, 1
        %s307 = scalar_lea.sflag [#allocation6], %s306
        %s308 = sand.u32 %s209, 1
        %s309 = scalar_lea.vmem [#allocation7], %s308
        %s310 = smul.u32 32, %s30
        %p311 = scmp.lt.s32.totalorder %s29, 1
        %s312 = scalar_select %p311, %s29, 1
        %p313 = scmp.lt.s32.totalorder %s310, 31
        %s314 = scalar_select %p313, %s310, 31
        %s315 = smul.addr %s312, 32
        %s316 = sadd.s32 %s314, %s315
        %s317 = smul.addr %s316, 4
        %s318 = scalar_lea.vmem %s0, %s317
        %s319 = smul.u32 32, %s30
        %p321 = scmp.eq.s32.totalorder %s30, 0
        // Predicated region
        $region41: #{tpu_custom_call.1} parent=39 // pred_check
          %p322 = pneg %p321
        $region42: #{tpu_custom_call.1} parent=39 // pred_check_branch
          %324 = sbr.rel (%p322) target = $region44
        $region43: #{tpu_custom_call.1} parent=39 // pred_region
          %325 = vst [vmem:[#allocation2] sm:$0x1] 0.0
        $region44: #{tpu_custom_call.1} parent=39 // pred_fallthru
          _
        %v326 = vld [vmem:[%s318] sm:$0xf]
        %v327 = vld [vmem:[%s318 + $0x4] sm:$0xf]
        %v328 = vld [vmem:[%s318 + $0x8] sm:$0xf]
        %v329 = vld [vmem:[%s318 + $0xc] sm:$0xf]
        %v330 = vld [vmem:[%s318 + $0x10] sm:$0xf]
        %v331 = vld [vmem:[%s318 + $0x14] sm:$0xf]
        %v332 = vld [vmem:[%s318 + $0x18] sm:$0xf]
        %v333 = vld [vmem:[%s318 + $0x1c] sm:$0xf]
        %v334 = vld [vmem:[%s318 + $0x20] sm:$0xf]
        %v335 = vld [vmem:[%s318 + $0x24] sm:$0xf]
        %v336 = vld [vmem:[%s318 + $0x28] sm:$0xf]
        %v337 = vld [vmem:[%s318 + $0x2c] sm:$0xf]
        %v338 = vld [vmem:[%s318 + $0x30] sm:$0xf]
        %v339 = vld [vmem:[%s318 + $0x34] sm:$0xf]
        %v340 = vld [vmem:[%s318 + $0x38] sm:$0xf]
        %v341 = vld [vmem:[%s318 + $0x3c] sm:$0xf]
        %v342 = vld [vmem:[%s318 + $0x40] sm:$0xf]
        %v343 = vld [vmem:[%s318 + $0x44] sm:$0xf]
        %v344 = vld [vmem:[%s318 + $0x48] sm:$0xf]
        %v345 = vld [vmem:[%s318 + $0x4c] sm:$0xf]
        %v346 = vld [vmem:[%s318 + $0x50] sm:$0xf]
        %v347 = vld [vmem:[%s318 + $0x54] sm:$0xf]
        %v348 = vld [vmem:[%s318 + $0x58] sm:$0xf]
        %v349 = vld [vmem:[%s318 + $0x5c] sm:$0xf]
        %v350 = vld [vmem:[%s318 + $0x60] sm:$0xf]
        %v351 = vld [vmem:[%s318 + $0x64] sm:$0xf]
        %v352 = vld [vmem:[%s318 + $0x68] sm:$0xf]
        %v353 = vld [vmem:[%s318 + $0x6c] sm:$0xf]
        %v354 = vld [vmem:[%s318 + $0x70] sm:$0xf]
        %v355 = vld [vmem:[%s318 + $0x74] sm:$0xf]
        %v356 = vld [vmem:[%s318 + $0x78] sm:$0xf]
        %v357 = vld [vmem:[%s318 + $0x7c] sm:$0xf]
        %v358 = vld [vmem:[%s1] sm:$0xf]
        %v359 = vld [vmem:[%s1 + $0x4] sm:$0xf]
        %v360 = vld [vmem:[%s1 + $0x8] sm:$0xf]
        %v361 = vld [vmem:[%s1 + $0xc] sm:$0xf]
        %v362 = vld [vmem:[%s1 + $0x10] sm:$0x3]
        %v363 = vld [vmem:[%s2] sm:$0x1]
        %v365 = vlaneseq
        %v366 = vshrl.u32 %v365, 7
        %v367 = vsub.s32 0, %v366
        %v368 = vrot.slane %v363, %v367
        %v402 = vunpack.c.l.b16 %v326
        %v403 = vunpack.c.l.b16 %v327
        %v404 = vunpack.c.l.b16 %v328
        %v405 = vunpack.c.l.b16 %v329
        %v406 = vunpack.c.l.b16 %v330
        %v407 = vunpack.c.l.b16 %v331
        %v408 = vunpack.c.l.b16 %v332
        %v409 = vunpack.c.l.b16 %v333
        %v410 = vunpack.c.l.b16 %v334
        %v411 = vunpack.c.l.b16 %v335
        %v412 = vunpack.c.l.b16 %v336
        %v413 = vunpack.c.l.b16 %v337
        %v414 = vunpack.c.l.b16 %v338
        %v415 = vunpack.c.l.b16 %v339
        %v416 = vunpack.c.l.b16 %v340
        %v417 = vunpack.c.l.b16 %v341
        %v418 = vunpack.c.l.b16 %v342
        %v419 = vunpack.c.l.b16 %v343
        %v420 = vunpack.c.l.b16 %v344
        %v421 = vunpack.c.l.b16 %v345
        %v422 = vunpack.c.l.b16 %v346
        %v423 = vunpack.c.l.b16 %v347
        %v424 = vunpack.c.l.b16 %v348
        %v425 = vunpack.c.l.b16 %v349
        %v426 = vunpack.c.l.b16 %v350
        %v427 = vunpack.c.l.b16 %v351
        %v428 = vunpack.c.l.b16 %v352
        %v429 = vunpack.c.l.b16 %v353
        %v430 = vunpack.c.l.b16 %v354
        %v431 = vunpack.c.l.b16 %v355
        %v432 = vunpack.c.l.b16 %v356
        %v433 = vunpack.c.l.b16 %v357
        %v434 = vpack.c.b16 %v403, %v402
        %v435 = vpack.c.b16 %v405, %v404
        %v436 = vpack.c.b16 %v407, %v406
        %v437 = vpack.c.b16 %v409, %v408
        %v438 = vpack.c.b16 %v411, %v410
        %v439 = vpack.c.b16 %v413, %v412
        %v440 = vpack.c.b16 %v415, %v414
        %v441 = vpack.c.b16 %v417, %v416
        %v442 = vpack.c.b16 %v419, %v418
        %v443 = vpack.c.b16 %v421, %v420
        %v444 = vpack.c.b16 %v423, %v422
        %v445 = vpack.c.b16 %v425, %v424
        %v446 = vpack.c.b16 %v427, %v426
        %v447 = vpack.c.b16 %v429, %v428
        %v448 = vpack.c.b16 %v431, %v430
        %v449 = vpack.c.b16 %v433, %v432
        %v455 = vunpack.c.l.b16 %v358
        %v456 = vunpack.c.l.b16 %v359
        %v457 = vunpack.c.l.b16 %v360
        %v458 = vunpack.c.l.b16 %v361
        %v459 = vunpack.c.l.b16 %v362
        %v460 = vpack.c.b16 %v456, %v455
        %v461 = vpack.c.b16 %v458, %v457
        %v462 = vpack.c.b16 %v459, %v459
        %vm465 = vcmask 293888
        %v467 = vsel %vm465, %v434, 0
        %v470 = vsel %vm465, %v435, 0
        %v473 = vsel %vm465, %v436, 0
        %v476 = vsel %vm465, %v437, 0
        %v479 = vsel %vm465, %v438, 0
        %v482 = vsel %vm465, %v439, 0
        %v485 = vsel %vm465, %v440, 0
        %v488 = vsel %vm465, %v441, 0
        %v491 = vsel %vm465, %v442, 0
        %v494 = vsel %vm465, %v443, 0
        %v497 = vsel %vm465, %v444, 0
        %v500 = vsel %vm465, %v445, 0
        %v503 = vsel %vm465, %v446, 0
        %v506 = vsel %vm465, %v447, 0
        %v509 = vsel %vm465, %v448, 0
        %v512 = vsel %vm465, %v449, 0
        %vm514 = vcmask 1041408
        %v516 = vsel %vm514, %v462, 0
        %518 = vmatprep.subr.bf16.mxu0 0
        %519 = vmatpush1.bf16.msra.mxu0 %v460
        %520 = vmatprep.subr.bf16.mxu0 0
        %521 = vmatpush1.bf16.msra.mxu0 %v461
        %522 = vmatprep.subr.bf16.mxu0 0
        %523 = vmatpush1.bf16.msra.mxu0 %v516
        %524 = vmatprep.subr.bf16.mxu0 0
        %525 = vmatpush1.bf16.msra.mxu0 0
        %526 = vmatprep.subr.bf16.mxu0 0
        %527 = vmatpush1.bf16.msra.mxu0 0
        %528 = vmatprep.subr.bf16.mxu0 0
        %529 = vmatpush1.bf16.msra.mxu0 0
        %530 = vmatprep.subr.bf16.mxu0 0
        %531 = vmatpush1.bf16.msra.mxu0 0
        %532 = vmatprep.subr.bf16.mxu0 0
        %533 = vmatpush1.bf16.msra.mxu0 0
        %534 = vmatprep.subr.bf16.mxu0 0
        %535 = vmatpush1.bf16.msra.mxu0 0
        %536 = vmatprep.subr.bf16.mxu0 0
        %537 = vmatpush1.bf16.msra.mxu0 0
        %538 = vmatprep.subr.bf16.mxu0 0
        %539 = vmatpush1.bf16.msra.mxu0 0
        %540 = vmatprep.subr.bf16.mxu0 0
        %541 = vmatpush1.bf16.msra.mxu0 0
        %542 = vmatprep.subr.bf16.mxu0 0
        %543 = vmatpush1.bf16.msra.mxu0 0
        %544 = vmatprep.subr.bf16.mxu0 0
        %545 = vmatpush1.bf16.msra.mxu0 0
        %546 = vmatprep.subr.bf16.mxu0 0
        %547 = vmatpush1.bf16.msra.mxu0 0
        %548 = vmatprep.subr.bf16.mxu0 0
        %549 = vmatpush1.bf16.msra.mxu0 0
        %550 = vmatprep.mubr.bf16.mxu0 0
        %551 = vmatmul.mubr.bf16.gmra.mrb[0].mxu0 %v467
        %v552 = vpop.f32.mrb[0].mxu0
        %v553 = vadd.f32 %v368, %v552
        %v554 = vpop.f32.mrb[0].mxu0
        %v555 = vpop.f32.mrb[0].mxu0
        %v556 = vadd.f32 %v368, %v555
        %v557 = vpop.f32.mrb[0].mxu0
        %558 = vmatprep.mubr.bf16.mxu0 0
        %559 = vmatmul.mubr.bf16.gmra.mrb[0].mxu0 %v470
        %v560 = vpop.f32.mrb[0].mxu0
        %v561 = vadd.f32 %v368, %v560
        %v562 = vpop.f32.mrb[0].mxu0
        %v563 = vpop.f32.mrb[0].mxu0
        %v564 = vadd.f32 %v368, %v563
        %v565 = vpop.f32.mrb[0].mxu0
        %566 = vmatprep.mubr.bf16.mxu0 0
        %567 = vmatmul.mubr.bf16.gmra.mrb[0].mxu0 %v473
        %v568 = vpop.f32.mrb[0].mxu0
        %v569 = vadd.f32 %v368, %v568
        %v570 = vpop.f32.mrb[0].mxu0
        %v571 = vpop.f32.mrb[0].mxu0
        %v572 = vadd.f32 %v368, %v571
        %v573 = vpop.f32.mrb[0].mxu0
        %574 = vmatprep.mubr.bf16.mxu0 0
        %575 = vmatmul.mubr.bf16.gmra.mrb[0].mxu0 %v476
        %v576 = vpop.f32.mrb[0].mxu0
        %v577 = vadd.f32 %v368, %v576
        %v578 = vpop.f32.mrb[0].mxu0
        %v579 = vpop.f32.mrb[0].mxu0
        %v580 = vadd.f32 %v368, %v579
        %v581 = vpop.f32.mrb[0].mxu0
        %582 = vmatprep.mubr.bf16.mxu0 0
        %583 = vmatmul.mubr.bf16.gmra.mrb[0].mxu0 %v479
        %v584 = vpop.f32.mrb[0].mxu0
        %v585 = vadd.f32 %v368, %v584
        %v586 = vpop.f32.mrb[0].mxu0
        %v587 = vpop.f32.mrb[0].mxu0
        %v588 = vadd.f32 %v368, %v587
        %v589 = vpop.f32.mrb[0].mxu0
        %590 = vmatprep.mubr.bf16.mxu0 0
        %591 = vmatmul.mubr.bf16.gmra.mrb[0].mxu0 %v482
        %v592 = vpop.f32.mrb[0].mxu0
        %v593 = vadd.f32 %v368, %v592
        %v594 = vpop.f32.mrb[0].mxu0
        %v595 = vpop.f32.mrb[0].mxu0
        %v596 = vadd.f32 %v368, %v595
        %v597 = vpop.f32.mrb[0].mxu0
        %598 = vmatprep.mubr.bf16.mxu0 0
        %599 = vmatmul.mubr.bf16.gmra.mrb[0].mxu0 %v485
        %v600 = vpop.f32.mrb[0].mxu0
        %v601 = vadd.f32 %v368, %v600
        %v602 = vpop.f32.mrb[0].mxu0
        %v603 = vpop.f32.mrb[0].mxu0
        %v604 = vadd.f32 %v368, %v603
        %v605 = vpop.f32.mrb[0].mxu0
        %606 = vmatprep.mubr.bf16.mxu0 0
        %607 = vmatmul.mubr.bf16.gmra.mrb[0].mxu0 %v488
        %v608 = vpop.f32.mrb[0].mxu0
        %v609 = vadd.f32 %v368, %v608
        %v610 = vpop.f32.mrb[0].mxu0
        %v611 = vpop.f32.mrb[0].mxu0
        %v612 = vadd.f32 %v368, %v611
        %v613 = vpop.f32.mrb[0].mxu0
        %614 = vmatprep.mubr.bf16.mxu0 0
        %615 = vmatmul.mubr.bf16.gmra.mrb[0].mxu0 %v491
        %v616 = vpop.f32.mrb[0].mxu0
        %v617 = vadd.f32 %v368, %v616
        %v618 = vpop.f32.mrb[0].mxu0
        %v619 = vpop.f32.mrb[0].mxu0
        %v620 = vadd.f32 %v368, %v619
        %v621 = vpop.f32.mrb[0].mxu0
        %622 = vmatprep.mubr.bf16.mxu0 0
        %623 = vmatmul.mubr.bf16.gmra.mrb[0].mxu0 %v494
        %v624 = vpop.f32.mrb[0].mxu0
        %v625 = vadd.f32 %v368, %v624
        %v626 = vpop.f32.mrb[0].mxu0
        %v627 = vpop.f32.mrb[0].mxu0
        %v628 = vadd.f32 %v368, %v627
        %v629 = vpop.f32.mrb[0].mxu0
        %630 = vmatprep.mubr.bf16.mxu0 0
        %631 = vmatmul.mubr.bf16.gmra.mrb[0].mxu0 %v497
        %v632 = vpop.f32.mrb[0].mxu0
        %v633 = vadd.f32 %v368, %v632
        %v634 = vpop.f32.mrb[0].mxu0
        %v635 = vpop.f32.mrb[0].mxu0
        %v636 = vadd.f32 %v368, %v635
        %v637 = vpop.f32.mrb[0].mxu0
        %638 = vmatprep.mubr.bf16.mxu0 0
        %639 = vmatmul.mubr.bf16.gmra.mrb[0].mxu0 %v500
        %v640 = vpop.f32.mrb[0].mxu0
        %v641 = vadd.f32 %v368, %v640
        %v642 = vpop.f32.mrb[0].mxu0
        %v643 = vpop.f32.mrb[0].mxu0
        %v644 = vadd.f32 %v368, %v643
        %v645 = vpop.f32.mrb[0].mxu0
        %646 = vmatprep.mubr.bf16.mxu0 0
        %647 = vmatmul.mubr.bf16.gmra.mrb[0].mxu0 %v503
        %v648 = vpop.f32.mrb[0].mxu0
        %v649 = vadd.f32 %v368, %v648
        %v650 = vpop.f32.mrb[0].mxu0
        %v651 = vpop.f32.mrb[0].mxu0
        %v652 = vadd.f32 %v368, %v651
        %v653 = vpop.f32.mrb[0].mxu0
        %654 = vmatprep.mubr.bf16.mxu0 0
        %655 = vmatmul.mubr.bf16.gmra.mrb[0].mxu0 %v506
        %v656 = vpop.f32.mrb[0].mxu0
        %v657 = vadd.f32 %v368, %v656
        %v658 = vpop.f32.mrb[0].mxu0
        %v659 = vpop.f32.mrb[0].mxu0
        %v660 = vadd.f32 %v368, %v659
        %v661 = vpop.f32.mrb[0].mxu0
        %662 = vmatprep.mubr.bf16.mxu0 0
        %663 = vmatmul.mubr.bf16.gmra.mrb[0].mxu0 %v509
        %v664 = vpop.f32.mrb[0].mxu0
        %v665 = vadd.f32 %v368, %v664
        %v666 = vpop.f32.mrb[0].mxu0
        %v667 = vpop.f32.mrb[0].mxu0
        %v668 = vadd.f32 %v368, %v667
        %v669 = vpop.f32.mrb[0].mxu0
        %670 = vmatprep.mubr.bf16.mxu0 0
        %671 = vmatmul.mubr.bf16.gmra.mrb[0].mxu0 %v512
        %v672 = vpop.f32.mrb[0].mxu0
        %v673 = vadd.f32 %v368, %v672
        %v674 = vpop.f32.mrb[0].mxu0
        %v675 = vpop.f32.mrb[0].mxu0
        %v676 = vadd.f32 %v368, %v675
        %v677 = vpop.f32.mrb[0].mxu0
        %678 = vdwg.mxu0
        %v679 = vmax.f32 %v553, 0.0
        %v680 = vmax.f32 %v556, 0.0
        %v681 = vmax.f32 %v561, 0.0
        %v682 = vmax.f32 %v564, 0.0
        %v683 = vmax.f32 %v569, 0.0
        %v684 = vmax.f32 %v572, 0.0
        %v685 = vmax.f32 %v577, 0.0
        %v686 = vmax.f32 %v580, 0.0
        %v687 = vmax.f32 %v585, 0.0
        %v688 = vmax.f32 %v588, 0.0
        %v689 = vmax.f32 %v593, 0.0
        %v690 = vmax.f32 %v596, 0.0
        %v691 = vmax.f32 %v601, 0.0
        %v692 = vmax.f32 %v604, 0.0
        %v693 = vmax.f32 %v609, 0.0
        %v694 = vmax.f32 %v612, 0.0
        %v695 = vmax.f32 %v617, 0.0
        %v696 = vmax.f32 %v620, 0.0
        %v697 = vmax.f32 %v625, 0.0
        %v698 = vmax.f32 %v628, 0.0
        %v699 = vmax.f32 %v633, 0.0
        %v700 = vmax.f32 %v636, 0.0
        %v701 = vmax.f32 %v641, 0.0
        %v702 = vmax.f32 %v644, 0.0
        %v703 = vmax.f32 %v649, 0.0
        %v704 = vmax.f32 %v652, 0.0
        %v705 = vmax.f32 %v657, 0.0
        %v706 = vmax.f32 %v660, 0.0
        %v707 = vmax.f32 %v665, 0.0
        %v708 = vmax.f32 %v668, 0.0
        %v709 = vmax.f32 %v673, 0.0
        %v710 = vmax.f32 %v676, 0.0
        %v711 = vld [vmem:[#allocation2] sm:$0x1]
        %v712 = vadd.f32 %v679, %v680
        %v713 = vadd.f32 %v712, %v681
        %v714 = vadd.f32 %v713, %v682
        %v715 = vadd.f32 %v714, %v683
        %v716 = vadd.f32 %v715, %v684
        %v717 = vadd.f32 %v716, %v685
        %v718 = vadd.f32 %v717, %v686
        %v719 = vadd.f32 %v718, %v687
        %v720 = vadd.f32 %v719, %v688
        %v721 = vadd.f32 %v720, %v689
        %v722 = vadd.f32 %v721, %v690
        %v723 = vadd.f32 %v722, %v691
        %v724 = vadd.f32 %v723, %v692
        %v725 = vadd.f32 %v724, %v693
        %v726 = vadd.f32 %v725, %v694
        %v727 = vadd.f32 %v726, %v695
        %v728 = vadd.f32 %v727, %v696
        %v729 = vadd.f32 %v728, %v697
        %v730 = vadd.f32 %v729, %v698
        %v731 = vadd.f32 %v730, %v699
        %v732 = vadd.f32 %v731, %v700
        %v733 = vadd.f32 %v732, %v701
        %v734 = vadd.f32 %v733, %v702
        %v735 = vadd.f32 %v734, %v703
        %v736 = vadd.f32 %v735, %v704
        %v737 = vadd.f32 %v736, %v705
        %v738 = vadd.f32 %v737, %v706
        %v739 = vadd.f32 %v738, %v707
        %v740 = vadd.f32 %v739, %v708
        %v741 = vadd.f32 %v740, %v709
        %v742 = vadd.f32 %v741, %v710
        %v743 = vrot.slane %v742, 4
        %v744 = vadd.f32 %v742, %v743
        %v745 = vrot.slane %v744, 2
        %v746 = vadd.f32 %v744, %v745
        %v747 = vrot.slane %v746, 1
        %v748 = vadd.f32 %v746, %v747
        %v749 = vadd.f32 %v711, %v748
        %750 = vst [vmem:[#allocation2] sm:$0x1] %v749
        // Predicated region
        $region45: #{tpu_custom_call.1} parent=39 // pred_check
          %p751 = pneg %p321
        $region46: #{tpu_custom_call.1} parent=39 // pred_check_branch
          %753 = sbr.rel (%p751) target = $region48
        $region47: #{tpu_custom_call.1} parent=39 // pred_region
          %v754 = vld [vmem:[#allocation2] sm:$0x1]
          %v755 = vld [vmem:[%s3] sm:$0xff]
          %v756 = vld [vmem:[%s3 + $0x8] sm:$0xff]
          %v757 = vld [vmem:[%s3 + $0x10] sm:$0xff]
          %v758 = vld [vmem:[%s3 + $0x18] sm:$0xff]
          %v759 = vld [vmem:[%s3 + $0x20] sm:$0xff]
          %v760 = vld [vmem:[%s3 + $0x28] sm:$0xff]
          %v761 = vld [vmem:[%s3 + $0x30] sm:$0xff]
          %v762 = vld [vmem:[%s3 + $0x38] sm:$0xff]
          %v763 = vld [vmem:[%s3 + $0x40] sm:$0xff]
          %v764 = vld [vmem:[%s3 + $0x48] sm:$0xff]
          %v765 = vld [vmem:[%s3 + $0x50] sm:$0xff]
          %v766 = vld [vmem:[%s3 + $0x58] sm:$0xff]
          %v767 = vld [vmem:[%s3 + $0x60] sm:$0xff]
          %v768 = vld [vmem:[%s3 + $0x68] sm:$0xff]
          %v769 = vld [vmem:[%s3 + $0x70] sm:$0xff]
          %v770 = vld [vmem:[%s3 + $0x78] sm:$0xff]
          %v771 = vld [vmem:[%s3 + $0x80] sm:$0xff]
          %v772 = vld [vmem:[%s3 + $0x88] sm:$0xff]
          %v773 = vld [vmem:[%s3 + $0x90] sm:$0xff]
          %v774 = vld [vmem:[%s3 + $0x98] sm:$0xff]
          %v775 = vld [vmem:[%s3 + $0xa0] sm:$0xff]
          %v776 = vld [vmem:[%s3 + $0xa8] sm:$0xff]
          %v777 = vld [vmem:[%s3 + $0xb0] sm:$0xff]
          %v778 = vld [vmem:[%s3 + $0xb8] sm:$0xff]
          %v779 = vld [vmem:[%s3 + $0xc0] sm:$0xff]
          %v780 = vld [vmem:[%s3 + $0xc8] sm:$0xff]
          %v781 = vld [vmem:[%s3 + $0xd0] sm:$0xff]
          %v782 = vld [vmem:[%s3 + $0xd8] sm:$0xff]
          %v783 = vld [vmem:[%s3 + $0xe0] sm:$0xff]
          %v784 = vld [vmem:[%s3 + $0xe8] sm:$0xff]
          %v785 = vld [vmem:[%s3 + $0xf0] sm:$0xff]
          %v786 = vld [vmem:[%s3 + $0xf8] sm:$0xff]
          %787 = vmatprep.subr.mxu0 %v756
          %788 = vmatpush1.msra.mxu0 %v755
          %789 = vmatprep.subr.mxu0 %v758
          %790 = vmatpush1.msra.mxu0 %v757
          %791 = vmatprep.subr.mxu0 %v760
          %792 = vmatpush1.msra.mxu0 %v759
          %793 = vmatprep.subr.mxu0 %v762
          %794 = vmatpush1.msra.mxu0 %v761
          %795 = vmatprep.subr.mxu0 %v764
          %796 = vmatpush1.msra.mxu0 %v763
          %797 = vmatprep.subr.mxu0 %v766
          %798 = vmatpush1.msra.mxu0 %v765
          %799 = vmatprep.subr.mxu0 %v768
          %800 = vmatpush1.msra.mxu0 %v767
          %801 = vmatprep.subr.mxu0 %v770
          %802 = vmatpush1.msra.mxu0 %v769
          %803 = vmatprep.subr.mxu0 %v772
          %804 = vmatpush1.msra.mxu0 %v771
          %805 = vmatprep.subr.mxu0 %v774
          %806 = vmatpush1.msra.mxu0 %v773
          %807 = vmatprep.subr.mxu0 %v776
          %808 = vmatpush1.msra.mxu0 %v775
          %809 = vmatprep.subr.mxu0 %v778
          %810 = vmatpush1.msra.mxu0 %v777
          %811 = vmatprep.subr.mxu0 %v780
          %812 = vmatpush1.msra.mxu0 %v779
          %813 = vmatprep.subr.mxu0 %v782
          %814 = vmatpush1.msra.mxu0 %v781
          %815 = vmatprep.subr.mxu0 %v784
          %816 = vmatpush1.msra.mxu0 %v783
          %817 = vmatprep.subr.mxu0 %v786
          %818 = vmatpush1.msra.mxu0 %v785
          %819 = vmatprep.subr.mxu0 0.0
          %820 = vmatpush1.msra.mxu0 0.0
          %821 = vmatprep.subr.mxu0 0.0
          %822 = vmatpush1.msra.mxu0 0.0
          %823 = vmatprep.subr.mxu0 0.0
          %824 = vmatpush1.msra.mxu0 0.0
          %825 = vmatprep.subr.mxu0 0.0
          %826 = vmatpush1.msra.mxu0 0.0
          %827 = vmatprep.subr.mxu0 0.0
          %828 = vmatpush1.msra.mxu0 0.0
          %829 = vmatprep.subr.mxu0 0.0
          %830 = vmatpush1.msra.mxu0 0.0
          %831 = vmatprep.subr.mxu0 0.0
          %832 = vmatpush1.msra.mxu0 0.0
          %833 = vmatprep.subr.mxu0 0.0
          %834 = vmatpush1.msra.mxu0 0.0
          %835 = vmatprep.subr.mxu0 0.0
          %836 = vmatpush1.msra.mxu0 0.0
          %837 = vmatprep.subr.mxu0 0.0
          %838 = vmatpush1.msra.mxu0 0.0
          %839 = vmatprep.subr.mxu0 0.0
          %840 = vmatpush1.msra.mxu0 0.0
          %841 = vmatprep.subr.mxu0 0.0
          %842 = vmatpush1.msra.mxu0 0.0
          %843 = vmatprep.subr.mxu0 0.0
          %844 = vmatpush1.msra.mxu0 0.0
          %845 = vmatprep.subr.mxu0 0.0
          %846 = vmatpush1.msra.mxu0 0.0
          %847 = vmatprep.subr.mxu0 0.0
          %848 = vmatpush1.msra.mxu0 0.0
          %849 = vmatprep.subr.mxu0 0.0
          %850 = vmatpush1.msra.mxu0 0.0
          %851 = vmatprep.mubr.f32.mxu0 0.0
          %852 = vmatmul.mubr.f32.gmra.mrb[0].mxu0 %v754
          %v853 = vpop.f32.mrb[0].mxu0
          %v854 = vadd.f32 0.0, %v853
          %v855 = vpop.f32.mrb[0].mxu0
          %v856 = vadd.f32 0.0, %v855
          %857 = vdwg.mxu0
          %v858 = vld [vmem:[%s4] sm:$0x3]
          %v859 = vadd.f32 %v854, %v858
          %v861 = vrot.slane %v858, 1
          %v863 = vadd.f32 %v856, %v861
          %864 = vst [vmem:[%s297] sm:$0x1] %v859
          %865 = vst [vmem:[%s303] sm:$0x1] %v863
          %v866 = vadd.f32 %v859, %v863
          %867 = vst [vmem:[%s309] sm:$0x1] %v866
        $region48: #{tpu_custom_call.1} parent=39 // pred_fallthru
          _
        %s868 = sand.u32 %s157, 1
        %s869 = scalar_lea.sflag [#allocation4], %s868
        %s870 = sand.u32 %s157, 1
        %s871 = scalar_lea.vmem [#allocation3], %s870
        %s872 = sand.u32 %s25, 1
        %s873 = scalar_lea.sflag [#allocation6], %s872
        %s874 = sand.u32 %s183, 1
        %s875 = scalar_lea.vmem [#allocation5], %s874
        %s876 = sand.u32 %s25, 1
        %s877 = scalar_lea.sflag [#allocation6], %s876
        %s878 = sand.u32 %s209, 1
        %s879 = scalar_lea.vmem [#allocation7], %s878
        // Predicated region
        $region49: #{tpu_custom_call.1} parent=39 // pred_check
          %p880 = pneg %p167
        $region50: #{tpu_custom_call.1} parent=39 // pred_check_branch
          %882 = sbr.rel (%p880) target = $region52
        $region51: #{tpu_custom_call.1} parent=39 // pred_region
          %s884 = ssub.s32 16, 16
          %885 = vsyncadd %s869, %s884
          %s886 = smul.addr %s29, 16
          %s887 = scalar_lea.hbm %s5, %s886
          %s889 = sshll.u32 %s871, 4
          %s890 = int_to_ptr.vmem [resolvable:$true] %s889
          %892 = dma.vmem_to_hbm [thread:$0]  %s890, 16, %s887, %s869
        $region52: #{tpu_custom_call.1} parent=39 // pred_fallthru
          _
        // Predicated region
        $region53: #{tpu_custom_call.1} parent=39 // pred_check
          %p893 = pneg %p193
        $region54: #{tpu_custom_call.1} parent=39 // pred_check_branch
          %895 = sbr.rel (%p893) target = $region56
        $region55: #{tpu_custom_call.1} parent=39 // pred_region
          %s897 = ssub.s32 16, 16
          %898 = vsyncadd %s873, %s897
          %s899 = smul.addr %s29, 16
          %s900 = scalar_lea.hbm %s6, %s899
          %s902 = sshll.u32 %s875, 4
          %s903 = int_to_ptr.vmem [resolvable:$true] %s902
          %905 = dma.vmem_to_hbm [thread:$0]  %s903, 16, %s900, %s873
        $region56: #{tpu_custom_call.1} parent=39 // pred_fallthru
          _
        // Predicated region
        $region57: #{tpu_custom_call.1} parent=39 // pred_check
          %p906 = pneg %p219
        $region58: #{tpu_custom_call.1} parent=39 // pred_check_branch
          %908 = sbr.rel (%p906) target = $region60
        $region59: #{tpu_custom_call.1} parent=39 // pred_region
          %s910 = ssub.s32 16, 16
          %911 = vsyncadd %s877, %s910
          %s912 = smul.addr %s29, 16
          %s913 = scalar_lea.hbm %s7, %s912
          %s915 = sshll.u32 %s879, 4
          %s916 = int_to_ptr.vmem [resolvable:$true] %s915
          %918 = dma.vmem_to_hbm [thread:$0]  %s916, 16, %s913, %s877
        $region60: #{tpu_custom_call.1} parent=39 // pred_fallthru
          _
      $region40: #{tpu_custom_call.1} parent=5 // pred_fallthru
        _
      %p919 = scmp.le.s32.totalorder 2, %s20
      // Predicated region
      $region61: #{tpu_custom_call.1} parent=5 // pred_check
        %p920 = pneg %p919
      $region62: #{tpu_custom_call.1} parent=5 // pred_check_branch
        %922 = sbr.rel (%p920) target = $region64
      $region63: #{tpu_custom_call.1} parent=5 // pred_region
        %s923 = ssub.s32 %s20, 2
        // Predicated region
        $region65: #{tpu_custom_call.1} parent=63 // pred_check
          %p924 = pneg %p173
        $region66: #{tpu_custom_call.1} parent=63 // pred_check_branch
          %926 = sbr.rel (%p924) target = $region68
        $region67: #{tpu_custom_call.1} parent=63 // pred_region
          %s927 = sand.u32 %s158, 1
          %s928 = scalar_lea.sflag [#allocation4], %s927
          %s929 = sand.u32 %s158, 1
          %s930 = scalar_lea.vmem [#allocation3], %s929
          %931 = dma.done %s928, 16
        $region68: #{tpu_custom_call.1} parent=63 // pred_fallthru
          _
        // Predicated region
        $region69: #{tpu_custom_call.1} parent=63 // pred_check
          %p932 = pneg %p199
        $region70: #{tpu_custom_call.1} parent=63 // pred_check_branch
          %934 = sbr.rel (%p932) target = $region72
        $region71: #{tpu_custom_call.1} parent=63 // pred_region
          %s935 = sand.u32 %s26, 1
          %s936 = scalar_lea.sflag [#allocation6], %s935
          %s937 = sand.u32 %s184, 1
          %s938 = scalar_lea.vmem [#allocation5], %s937
          %939 = dma.done %s936, 16
        $region72: #{tpu_custom_call.1} parent=63 // pred_fallthru
          _
        // Predicated region
        $region73: #{tpu_custom_call.1} parent=63 // pred_check
          %p940 = pneg %p225
        $region74: #{tpu_custom_call.1} parent=63 // pred_check_branch
          %942 = sbr.rel (%p940) target = $region76
        $region75: #{tpu_custom_call.1} parent=63 // pred_region
          %s943 = sand.u32 %s26, 1
          %s944 = scalar_lea.sflag [#allocation6], %s943
          %s945 = sand.u32 %s210, 1
          %s946 = scalar_lea.vmem [#allocation7], %s945
          %947 = dma.done %s944, 16
        $region76: #{tpu_custom_call.1} parent=63 // pred_fallthru
          _
      $region64: #{tpu_custom_call.1} parent=5 // pred_fallthru
        _
    $region6: #{tpu_custom_call.1} parent=1 // loop_footer
      %s24 = sadd.s32 1, %s20
    $region7: #{tpu_custom_call.1} parent=1 // loop_footer_branch
      %19 = sbr.rel target = $region3
    $region8: #{tpu_custom_call.1} parent=1 // loop_exit
      _
    %948 = vsyncpa [#allocation4], 1
    %s949 = scalar_lea.sflag [#allocation4], 1
    %950 = vsyncpa %s949, 1
    %951 = vsyncpa [#allocation6], 1
    %s952 = scalar_lea.sflag [#allocation6], 1
    %953 = vsyncpa %s952, 1

</llo_original>
